<compile_context>
chip_gen: v5e
topology: v5e:2x2
jax: 0.10.0
libtpu: 0.0.40
codegen_flags: <defaults>
</compile_context>

<pallas_src>
import functools
import math

import jax
import jax.numpy as jnp
from jax.experimental import pallas as pl
from jax.experimental.pallas import tpu as pltpu

_C = 64       # in_channels fixed by the module
_KQ = 32      # q/k/v embed channels (only the 1/sqrt(32) scale survives fusion)
_WROWS = 136  # 64 (Wk^T Wq) + 64 (Wz Wv) + 1 + 1 rank-1 rows + 6 pad = 17*8


def _softmax_last(z):
    """Softmax over the last (lane) axis; divide moved to the EUP reciprocal."""
    m = jnp.max(z, axis=-1, keepdims=True)
    e = jnp.exp(z - m)
    s = jnp.sum(e, axis=-1, keepdims=True)
    return e * pl.reciprocal(s, approx=True)


def _temporal_transformer_kernel(x_ref, wproj_ref, bproj_ref, scal_ref,
                                 bz_ref, out_ref, *, tj):
    # x_ref    : (B, 64, L)  VMEM f32   (PyTorch NCL layout, L on lanes)
    # wproj_ref: (136, 64)   VMEM bf16  [Wk^T Wq | Wz Wv | Wk^T bq | Wq^T bk | 0]
    # bproj_ref: (136, 1)    VMEM f32   (rows 64:128 = Wz@bv, rest 0)
    # scal_ref : (4,)        SMEM f32   [w0[0], w0[1], b0, bq.bk]
    # bz_ref   : (64, 1)     VMEM f32   (conv_wz bias)
    # out_ref  : (B, 64, L)  VMEM f32
    B, C, L = x_ref.shape
    inv_sqrt_k = 1.0 / math.sqrt(float(_KQ))

    x = x_ref[...]                                    # (B, 64, L) f32
    x_bf = x.astype(jnp.bfloat16)                     # MXU operands in bf16

    # Fused per-position projection (one 136x64-deep matmul per sample):
    #   rows   0: 64 -> k' = (Wk^T Wq) x             (bilinear core of q^T k)
    #   rows  64:128 -> v' = (Wz Wv) x + Wz bv       (conv_wz folded into v)
    #   row  128     -> bq^T Wk x_j   (rank-1 bias term, varies with j)
    #   row  129     -> bk^T Wq x_i   (rank-1 bias term, varies with i)
    w_b = jnp.broadcast_to(wproj_ref[...], (B,) + wproj_ref.shape)
    proj = jnp.einsum('boc,bcl->bol', w_b, x_bf,
                      preferred_element_type=jnp.float32)
    proj = proj + bproj_ref[...][None]                # (B, 136, L) f32
    kq = proj[:, 0:64]                                # (B, 64, L)
    vz_bf = proj[:, 64:128].astype(jnp.bfloat16)      # (B, 64, L)
    rowvec = proj[:, 128]                             # (B, L), indexed by j
    colvec = proj[:, 129]                             # (B, L), indexed by i

    w0a = scal_ref[0]
    w0b = scal_ref[1]
    b0 = scal_ref[2]
    c0 = scal_ref[3]

    # Both logit maps come from ONE K=64 contraction against [x | k'] in
    # transposed (j, i) orientation: softmaxes run over the last axis and the
    # value aggregation below is a native (64,K)@(K,L) matmul -> lane-dense
    # (B,64,L) store with no transposes.
    rhs_bf = jnp.concatenate([x_bf, kq.astype(jnp.bfloat16)], axis=2)  # (B,64,2L)

    # j-tiling over the contraction axis bounds the quadratic slabs at
    # O(tj * 2L) (v7x: 64 MiB VMEM).  The softmax axis (i) is fully contained
    # in every slab, so no online-softmax bookkeeping is needed.  Chunk starts
    # are static Python ints.
    yz = jnp.zeros((B, C, L), jnp.float32)
    for t in range(L // tj):
        j0 = t * tj
        lhs_bf = x_bf[:, :, j0:j0 + tj]                          # (B, 64, tj)
        logits = jnp.einsum('bcj,bci->bji', lhs_bf, rhs_bf,
                            preferred_element_type=jnp.float32)  # (B, tj, 2L)
        nssm = _softmax_last(logits[:, :, :L])
        att_logits = (logits[:, :, L:]
                      + rowvec[:, j0:j0 + tj, None]
                      + colvec[:, None, :]
                      + c0) * inv_sqrt_k
        att = _softmax_last(att_logits)
        moca = _softmax_last(w0a * nssm + w0b * att + b0)        # (B, tj, L)
        yz = yz + jnp.einsum('boj,bji->boi',
                             vz_bf[:, :, j0:j0 + tj],
                             moca.astype(jnp.bfloat16),
                             preferred_element_type=jnp.float32)

    out_ref[...] = (x + yz + bz_ref[...][None]).astype(out_ref.dtype)


def _pick_batch_block(n, l):
    """Samples per grid step: pack small-L samples, keep >=2 steps for megacore."""
    target = max(1, 128 // max(l, 1))
    b = min(n, target)
    while b > 1 and n % b:
        b -= 1
    while b > 1 and (n // b) < 2:      # leave work for a 2nd TensorCore (v7x)
        b -= 1
        while b > 1 and n % b:
            b -= 1
    return max(b, 1)


def _pick_j_tile(l):
    """Static j-tile width; must divide L (falls back to no tiling)."""
    for cand in (512, 256, 128):
        if l % cand == 0:
            return cand
    return l


def _vmem_limit_bytes(b, c, l, tj):
    f32 = 4
    est = 0
    est += 2 * 2 * b * c * l * f32            # x + out blocks, double-buffered
    est += 3 * b * _WROWS * l * f32           # proj + bf16 slices + [x|k'] concat
    est += 2 * b * tj * 2 * l * f32           # logits slab + exp temp
    est += 3 * b * tj * l * f32               # nssm / atten / moca slabs
    est += 2 * b * c * l * f32                # yz accumulator
    est += 2 * (_WROWS * _C * 2 + (_WROWS + _C) * f32)   # resident weights
    est = int(est * 1.5) + (4 << 20)          # headroom
    return min(max(est, 16 << 20), 64 << 20)


def temporal_transformer_pallas(x, params):
    """x: (N, 64, L) float32 (PyTorch NCL layout). Returns (N, 64, L)."""
    n, c, l = x.shape
    assert c == _C, "module fixes in_channels at 64"
    wq, bq, wk, bk, wv, bv, w0, b0, wz, bz = params
    w0 = jnp.reshape(w0, (-1,)).astype(jnp.float32)    # Conv2d(2,1,1) weight
    b0 = jnp.reshape(b0, (-1,)).astype(jnp.float32)    # Conv2d(2,1,1) bias

    # Fold the entire linear structure into one (136, 64) projection.
    wkq = wk.T @ wq                                    # (64,64)  Wk^T Wq
    wzv = wz @ wv                                      # (64,64)  Wz Wv
    u = wk.T @ bq                                      # (64,) -> bq^T Wk x_j
    v_ = wq.T @ bk                                     # (64,) -> bk^T Wq x_i
    c0 = jnp.dot(bq, bk)                               # scalar  bq.bk
    w_proj = jnp.zeros((_WROWS, _C), jnp.float32)
    w_proj = w_proj.at[0:64].set(wkq).at[64:128].set(wzv)
    w_proj = w_proj.at[128].set(u).at[129].set(v_)
    w_proj = w_proj.astype(jnp.bfloat16)               # bf16 MXU operand
    b_proj = jnp.zeros((_WROWS, 1), jnp.float32).at[64:128, 0].set(wz @ bv)
    scal = jnp.stack([w0[0], w0[1], b0[0], c0]).astype(jnp.float32)
    bz_c = jnp.reshape(bz, (_C, 1)).astype(jnp.float32)

    b_blk = _pick_batch_block(n, l)
    assert n % b_blk == 0
    tj = _pick_j_tile(l)

    smem_spec = pl.BlockSpec(memory_space=pltpu.MemorySpace.SMEM)
    kernel = functools.partial(_temporal_transformer_kernel, tj=tj)

    out = pl.pallas_call(
        kernel,
        out_shape=jax.ShapeDtypeStruct((n, c, l), x.dtype),
        grid_spec=pltpu.PrefetchScalarGridSpec(
            num_scalar_prefetch=0,
            grid=(n // b_blk,),
            in_specs=[
                pl.BlockSpec((b_blk, c, l), lambda i: (i, 0, 0)),   # x
                pl.BlockSpec((_WROWS, _C), lambda i: (0, 0)),       # fused W
                pl.BlockSpec((_WROWS, 1), lambda i: (0, 0)),        # fused bias
                smem_spec,                                          # mix scalars
                pl.BlockSpec((_C, 1), lambda i: (0, 0)),            # conv_wz bias
            ],
            out_specs=pl.BlockSpec((b_blk, c, l), lambda i: (i, 0, 0)),
        ),
        compiler_params=pltpu.CompilerParams(
            dimension_semantics=("parallel",),
            vmem_limit_bytes=_vmem_limit_bytes(b_blk, c, l, tj)),
    )(x, w_proj, b_proj, scal, bz_c)
    return out


def init_params(key):
    """Deterministic synthetic weights matching the PyTorch layer shapes."""
    ks = jax.random.split(key, 10)
    s64 = 1.0 / jnp.sqrt(64.0)   # Conv1d(64, 32, 1)
    s2 = 1.0 / jnp.sqrt(2.0)     # Conv2d(2, 1, 1)
    s32 = 1.0 / jnp.sqrt(32.0)   # Conv1d(32, 64, 1)
    wq = jax.random.uniform(ks[0], (32, 64), jnp.float32, -s64, s64)
    bq = jax.random.uniform(ks[1], (32,), jnp.float32, -s64, s64)
    wk = jax.random.uniform(ks[2], (32, 64), jnp.float32, -s64, s64)
    bk = jax.random.uniform(ks[3], (32,), jnp.float32, -s64, s64)
    wv = jax.random.uniform(ks[4], (32, 64), jnp.float32, -s64, s64)
    bv = jax.random.uniform(ks[5], (32,), jnp.float32, -s64, s64)
    w0 = jax.random.uniform(ks[6], (2,), jnp.float32, -s2, s2)
    b0 = jax.random.uniform(ks[7], (1,), jnp.float32, -s2, s2)
    wz = jax.random.uniform(ks[8], (64, 32), jnp.float32, -s32, s32)
    bz = jax.random.uniform(ks[9], (64,), jnp.float32, -s32, s32)
    return (wq, bq, wk, bk, wv, bv, w0, b0, wz, bz)


def _reference(x, params):
    """Pure-JAX reference matching PyTorch Temporal_Transformer.forward."""
    wq, bq, wk, bk, wv, bv, w0, b0, wz, bz = params

    def conv1x1(x, w, b):
        return jnp.einsum('ncl,oc->nol', x, w) + b[None, :, None]

    nssm = jnp.einsum('ncl,ncm->nlm', x, x)               # (N, L, L)
    nssm = jax.nn.softmax(nssm, axis=1)
    q = conv1x1(x, wq, bq)
    k = conv1x1(x, wk, bk)
    v = conv1x1(x, wv, bv)
    atten = jnp.einsum('ncl,ncm->nlm', q, k) / math.sqrt(32.0)
    atten = jax.nn.softmax(atten, axis=1)
    moca = w0[0] * nssm + w0[1] * atten + b0[0]            # Conv2d(2,1,1)
    moca = jax.nn.softmax(moca, axis=1)
    y = jnp.einsum('nlm,ncm->nlc', moca, v)                # (N, L, 32)
    yz = jnp.einsum('oc,nlc->nol', wz, y) + bz[None, :, None]
    return x + yz


if __name__ == "__main__":
    key = jax.random.PRNGKey(0)
    kx, kp = jax.random.split(key)

    n, c, l = 4, _C, 16  # in_channels fixed at 64 by the module
    x = jax.random.normal(kx, (n, c, l), jnp.float32)
    params = init_params(kp)

    out = temporal_transformer_pallas(x, params)
    jax.block_until_ready(out)

    ref = _reference(x, params)
    assert out.shape == (n, c, l)
    # bf16 MXU operands + approx-reciprocal softmax -> looser tolerance than f32.
    assert jnp.allclose(out, ref, atol=5e-2, rtol=5e-2), "forward mismatch"

    print("KERNEL_OK")
</pallas_src>

<mosaic_0001>
module attributes {stable_mosaic.version = 11 : i64} {
  func.func @_temporal_transformer_kernel(%arg0: i32, %arg1: memref<2x64x16xf32, #tpu.memory_space<vmem>>, %arg2: memref<136x64xbf16, #tpu.memory_space<vmem>>, %arg3: memref<136x1xf32, #tpu.memory_space<vmem>>, %arg4: memref<4xf32, #tpu.memory_space<smem>>, %arg5: memref<64x1xf32, #tpu.memory_space<vmem>>, %arg6: memref<2x64x16xf32, #tpu.memory_space<vmem>>) attributes {dimension_semantics = [#tpu.dimension_semantics<parallel>], iteration_bounds = array<i64: 2>, scalar_prefetch = 0 : i64, scratch_operands = 0 : i64, tpu.core_type = #tpu.core_type<tc>, window_params = [{transform_indices = @transform_0, window_bounds = array<i64: 2, 64, 16>}, {pipeline_mode = #tpu.pipeline_mode<synchronous>, transform_indices = @transform_1, window_bounds = array<i64: 136, 64>}, {pipeline_mode = #tpu.pipeline_mode<synchronous>, transform_indices = @transform_2, window_bounds = array<i64: 136, 1>}, {transform_indices = @transform_3, window_bounds = array<i64: 4>}, {pipeline_mode = #tpu.pipeline_mode<synchronous>, transform_indices = @transform_4, window_bounds = array<i64: 64, 1>}, {transform_indices = @transform_5, window_bounds = array<i64: 2, 64, 16>}]} {
    %c0 = arith.constant 0 : index
    %c0_0 = arith.constant 0 : index
    %c0_1 = arith.constant 0 : index
    %0 = vector.load %arg1[%c0, %c0_0, %c0_1] : memref<2x64x16xf32, #tpu.memory_space<vmem>>, vector<2x64x16xf32>
    %1 = arith.truncf %0 : vector<2x64x16xf32> to vector<2x64x16xbf16>
    %c0_2 = arith.constant 0 : index
    %c0_3 = arith.constant 0 : index
    %2 = vector.load %arg2[%c0_2, %c0_3] : memref<136x64xbf16, #tpu.memory_space<vmem>>, vector<136x64xbf16>
    %3 = vector.shape_cast %2 : vector<136x64xbf16> to vector<1x136x64xbf16>
    %4 = vector.broadcast %3 : vector<1x136x64xbf16> to vector<2x136x64xbf16>
    "tpu.trace_start"() <{level = 10 : i32, message = "boc,bcl->bol"}> : () -> ()
    %cst = arith.constant dense<0.000000e+00> : vector<2x136x16xf32>
    %5 = tpu.matmul %4, %1, %cst {dimension_numbers = #tpu.dot_dimension_numbers<[2], [1], [1], [2], [0, 0, 0, 1, 1, 2], [0], [0]>} : vector<2x136x64xbf16>, vector<2x64x16xbf16>, vector<2x136x16xf32> -> vector<2x136x16xf32>
    "tpu.trace_stop"() : () -> ()
    %c0_4 = arith.constant 0 : index
    %c0_5 = arith.constant 0 : index
    %6 = vector.load %arg3[%c0_4, %c0_5] : memref<136x1xf32, #tpu.memory_space<vmem>>, vector<136x1xf32>
    %7 = vector.shape_cast %6 : vector<136x1xf32> to vector<1x136x1xf32>
    %8 = vector.broadcast %7 : vector<1x136x1xf32> to vector<2x136x16xf32>
    %9 = arith.addf %5, %8 : vector<2x136x16xf32>
    %10 = vector.extract_strided_slice %9 {offsets = [0, 0, 0], sizes = [2, 64, 16], strides = [1, 1, 1]} : vector<2x136x16xf32> to vector<2x64x16xf32>
    %11 = vector.extract_strided_slice %9 {offsets = [0, 64, 0], sizes = [2, 64, 16], strides = [1, 1, 1]} : vector<2x136x16xf32> to vector<2x64x16xf32>
    %12 = arith.truncf %11 : vector<2x64x16xf32> to vector<2x64x16xbf16>
    %13 = vector.extract_strided_slice %9 {offsets = [0, 128, 0], sizes = [2, 1, 16], strides = [1, 1, 1]} : vector<2x136x16xf32> to vector<2x1x16xf32>
    %14 = vector.shape_cast %13 : vector<2x1x16xf32> to vector<2x16xf32>
    %15 = vector.extract_strided_slice %9 {offsets = [0, 129, 0], sizes = [2, 1, 16], strides = [1, 1, 1]} : vector<2x136x16xf32> to vector<2x1x16xf32>
    %16 = vector.shape_cast %15 : vector<2x1x16xf32> to vector<2x16xf32>
    %c0_6 = arith.constant 0 : index
    %17 = memref.load %arg4[%c0_6] : memref<4xf32, #tpu.memory_space<smem>>
    %c1 = arith.constant 1 : index
    %18 = memref.load %arg4[%c1] : memref<4xf32, #tpu.memory_space<smem>>
    %c2 = arith.constant 2 : index
    %19 = memref.load %arg4[%c2] : memref<4xf32, #tpu.memory_space<smem>>
    %c3 = arith.constant 3 : index
    %20 = memref.load %arg4[%c3] : memref<4xf32, #tpu.memory_space<smem>>
    %21 = arith.truncf %10 : vector<2x64x16xf32> to vector<2x64x16xbf16>
    %22 = tpu.concatenate %1, %21 in 2 : vector<2x64x16xbf16>, vector<2x64x16xbf16> -> vector<2x64x32xbf16>
    %cst_7 = arith.constant 0.000000e+00 : f32
    %23 = vector.broadcast %cst_7 : f32 to vector<2x64x16xf32>
    "tpu.trace_start"() <{level = 10 : i32, message = "bcj,bci->bji"}> : () -> ()
    %cst_8 = arith.constant dense<0.000000e+00> : vector<2x16x32xf32>
    %24 = tpu.matmul %1, %22, %cst_8 {dimension_numbers = #tpu.dot_dimension_numbers<[1], [1], [2], [2], [0, 0, 0, 2, 1, 2], [0], [0]>} : vector<2x64x16xbf16>, vector<2x64x32xbf16>, vector<2x16x32xf32> -> vector<2x16x32xf32>
    "tpu.trace_stop"() : () -> ()
    %25 = vector.extract_strided_slice %24 {offsets = [0, 0, 0], sizes = [2, 16, 16], strides = [1, 1, 1]} : vector<2x16x32xf32> to vector<2x16x16xf32>
    %cst_9 = arith.constant dense<0xFF800000> : vector<2x16xf32>
    %26 = vector.multi_reduction <maximumf>, %25, %cst_9 [2] : vector<2x16x16xf32> to vector<2x16xf32>
    %27 = vector.shape_cast %26 : vector<2x16xf32> to vector<2x16x1xf32>
    %28 = vector.broadcast %27 : vector<2x16x1xf32> to vector<2x16x16xf32>
    %29 = arith.subf %25, %28 : vector<2x16x16xf32>
    %30 = math.exp %29 : vector<2x16x16xf32>
    %cst_10 = arith.constant dense<0.000000e+00> : vector<2x16xf32>
    %31 = vector.multi_reduction <add>, %30, %cst_10 [2] : vector<2x16x16xf32> to vector<2x16xf32>
    %32 = vector.shape_cast %31 : vector<2x16xf32> to vector<2x16x1xf32>
    %33 = tpu.reciprocal %32 {approx = true} : vector<2x16x1xf32> -> vector<2x16x1xf32>
    %34 = vector.broadcast %33 : vector<2x16x1xf32> to vector<2x16x16xf32>
    %35 = arith.mulf %30, %34 : vector<2x16x16xf32>
    %36 = vector.extract_strided_slice %24 {offsets = [0, 0, 16], sizes = [2, 16, 16], strides = [1, 1, 1]} : vector<2x16x32xf32> to vector<2x16x16xf32>
    %37 = vector.shape_cast %14 : vector<2x16xf32> to vector<2x16x1xf32>
    %38 = vector.broadcast %37 : vector<2x16x1xf32> to vector<2x16x16xf32>
    %39 = arith.addf %36, %38 : vector<2x16x16xf32>
    %40 = vector.shape_cast %16 : vector<2x16xf32> to vector<2x1x16xf32>
    %41 = vector.broadcast %40 : vector<2x1x16xf32> to vector<2x16x16xf32>
    %42 = arith.addf %39, %41 : vector<2x16x16xf32>
    %43 = vector.broadcast %20 : f32 to vector<2x16x16xf32>
    %44 = arith.addf %42, %43 : vector<2x16x16xf32>
    %cst_11 = arith.constant 0.176776692 : f32
    %45 = vector.broadcast %cst_11 : f32 to vector<2x16x16xf32>
    %46 = arith.mulf %44, %45 : vector<2x16x16xf32>
    %cst_12 = arith.constant dense<0xFF800000> : vector<2x16xf32>
    %47 = vector.multi_reduction <maximumf>, %46, %cst_12 [2] : vector<2x16x16xf32> to vector<2x16xf32>
    %48 = vector.shape_cast %47 : vector<2x16xf32> to vector<2x16x1xf32>
    %49 = vector.broadcast %48 : vector<2x16x1xf32> to vector<2x16x16xf32>
    %50 = arith.subf %46, %49 : vector<2x16x16xf32>
    %51 = math.exp %50 : vector<2x16x16xf32>
    %cst_13 = arith.constant dense<0.000000e+00> : vector<2x16xf32>
    %52 = vector.multi_reduction <add>, %51, %cst_13 [2] : vector<2x16x16xf32> to vector<2x16xf32>
    %53 = vector.shape_cast %52 : vector<2x16xf32> to vector<2x16x1xf32>
    %54 = tpu.reciprocal %53 {approx = true} : vector<2x16x1xf32> -> vector<2x16x1xf32>
    %55 = vector.broadcast %54 : vector<2x16x1xf32> to vector<2x16x16xf32>
    %56 = arith.mulf %51, %55 : vector<2x16x16xf32>
    %57 = vector.broadcast %17 : f32 to vector<2x16x16xf32>
    %58 = arith.mulf %57, %35 : vector<2x16x16xf32>
    %59 = vector.broadcast %18 : f32 to vector<2x16x16xf32>
    %60 = arith.mulf %59, %56 : vector<2x16x16xf32>
    %61 = arith.addf %58, %60 : vector<2x16x16xf32>
    %62 = vector.broadcast %19 : f32 to vector<2x16x16xf32>
    %63 = arith.addf %61, %62 : vector<2x16x16xf32>
    %cst_14 = arith.constant dense<0xFF800000> : vector<2x16xf32>
    %64 = vector.multi_reduction <maximumf>, %63, %cst_14 [2] : vector<2x16x16xf32> to vector<2x16xf32>
    %65 = vector.shape_cast %64 : vector<2x16xf32> to vector<2x16x1xf32>
    %66 = vector.broadcast %65 : vector<2x16x1xf32> to vector<2x16x16xf32>
    %67 = arith.subf %63, %66 : vector<2x16x16xf32>
    %68 = math.exp %67 : vector<2x16x16xf32>
    %cst_15 = arith.constant dense<0.000000e+00> : vector<2x16xf32>
    %69 = vector.multi_reduction <add>, %68, %cst_15 [2] : vector<2x16x16xf32> to vector<2x16xf32>
    %70 = vector.shape_cast %69 : vector<2x16xf32> to vector<2x16x1xf32>
    %71 = tpu.reciprocal %70 {approx = true} : vector<2x16x1xf32> -> vector<2x16x1xf32>
    %72 = vector.broadcast %71 : vector<2x16x1xf32> to vector<2x16x16xf32>
    %73 = arith.mulf %68, %72 : vector<2x16x16xf32>
    %74 = arith.truncf %73 : vector<2x16x16xf32> to vector<2x16x16xbf16>
    "tpu.trace_start"() <{level = 10 : i32, message = "boj,bji->boi"}> : () -> ()
    %cst_16 = arith.constant dense<0.000000e+00> : vector<2x64x16xf32>
    %75 = tpu.matmul %12, %74, %cst_16 {dimension_numbers = #tpu.dot_dimension_numbers<[2], [1], [1], [2], [0, 0, 0, 1, 1, 2], [0], [0]>} : vector<2x64x16xbf16>, vector<2x16x16xbf16>, vector<2x64x16xf32> -> vector<2x64x16xf32>
    "tpu.trace_stop"() : () -> ()
    %76 = arith.addf %23, %75 : vector<2x64x16xf32>
    %77 = arith.addf %0, %76 : vector<2x64x16xf32>
    %c0_17 = arith.constant 0 : index
    %c0_18 = arith.constant 0 : index
    %78 = vector.load %arg5[%c0_17, %c0_18] : memref<64x1xf32, #tpu.memory_space<vmem>>, vector<64x1xf32>
    %79 = vector.shape_cast %78 : vector<64x1xf32> to vector<1x64x1xf32>
    %80 = vector.broadcast %79 : vector<1x64x1xf32> to vector<2x64x16xf32>
    %81 = arith.addf %77, %80 : vector<2x64x16xf32>
    %c0_19 = arith.constant 0 : index
    %c0_20 = arith.constant 0 : index
    %c0_21 = arith.constant 0 : index
    %82 = vector.load %arg6[%c0_19, %c0_20, %c0_21] : memref<2x64x16xf32, #tpu.memory_space<vmem>>, vector<2x64x16xf32>
    tpu.vector_store %arg6[%c0_19, %c0_20, %c0_21], %81 {strides = array<i32>} : memref<2x64x16xf32, #tpu.memory_space<vmem>>, vector<2x64x16xf32>,
    return
  }
  func.func @transform_0(%arg0: i32) -> (i32, i32, i32) {
    %c0_i32 = arith.constant 0 : i32
    %c0_i32_0 = arith.constant 0 : i32
    %c0_i32_1 = arith.constant 0 : i32
    return %arg0, %c0_i32, %c0_i32_0 : i32, i32, i32
  }
  func.func @transform_1(%arg0: i32) -> (i32, i32) {
    %c0_i32 = arith.constant 0 : i32
    %c0_i32_0 = arith.constant 0 : i32
    %c0_i32_1 = arith.constant 0 : i32
    return %c0_i32, %c0_i32_0 : i32, i32
  }
  func.func @transform_2(%arg0: i32) -> (i32, i32) {
    %c0_i32 = arith.constant 0 : i32
    %c0_i32_0 = arith.constant 0 : i32
    %c0_i32_1 = arith.constant 0 : i32
    return %c0_i32, %c0_i32_0 : i32, i32
  }
  func.func @transform_3(%arg0: i32) -> i32 {
    %c0_i32 = arith.constant 0 : i32
    %c0_i32_0 = arith.constant 0 : i32
    return %c0_i32 : i32
  }
  func.func @transform_4(%arg0: i32) -> (i32, i32) {
    %c0_i32 = arith.constant 0 : i32
    %c0_i32_0 = arith.constant 0 : i32
    %c0_i32_1 = arith.constant 0 : i32
    return %c0_i32, %c0_i32_0 : i32, i32
  }
  func.func @transform_5(%arg0: i32) -> (i32, i32, i32) {
    %c0_i32 = arith.constant 0 : i32
    %c0_i32_0 = arith.constant 0 : i32
    %c0_i32_1 = arith.constant 0 : i32
    return %arg0, %c0_i32, %c0_i32_0 : i32, i32, i32
  }
}

</mosaic_0001>

<llo_original>
// kernel: tpu_custom_call.1
$region0: #{tpu_custom_call.1}
  #allocation0 [shape = 'u32[]', space=smem, size = 0x4, offset = 0x4, fixed_abs, tag = 'smem constant byte address 0x4 - core index']
  #allocation1 [shape = 'u32[72,128]{1,0:T(1,128)}', space=vmem, size = 0x9000, scoped, tag = 'internal scratch']
  %s0 = inlined_call_operand.vmem [shape: f32[4,64,16], index: 0, kind: input, shape index: {}]
  %s1 = inlined_call_operand.vmem [shape: bf16[136,64], index: 1, kind: input, shape index: {}]
  %s2 = inlined_call_operand.vmem [shape: f32[136,1], index: 2, kind: input, shape index: {}]
  %s3 = inlined_call_operand.vmem [shape: f32[4], index: 3, kind: input, shape index: {}]
  %s4 = inlined_call_operand.vmem [shape: f32[64,1], index: 4, kind: input, shape index: {}]
  %s5 = inlined_call_operand.vmem [shape: f32[4,64,16], index: 5, kind: output, shape index: {}]
  %s6 = sld [smem:[#allocation0]]
  $region57: #{tpu_custom_call.1} parent=0
    _
  %s8 = ssub.s32 1, %s6
  %s9 = scalar_select 0, %s8, %s6
  $region1: #{tpu_custom_call.1} parent=0
    #allocation2 [shape = 'u8[512]{0}', space=smem, size = 0x200, scoped, tag = 'input window, operand 3, single buffered']
    #allocation3 [shape = 's32[2]{0}', space=sflag, size = 0x8, scoped, tag = 'scoped memory for tpu_custom_call.1']
    %10 = vsyncpa [#allocation3], 0
    loop: start=0, step=1, limit=4
    $region2: #{tpu_custom_call.1} parent=1 // loop_pre_header
      _
    $region3: #{tpu_custom_call.1} parent=1 // loop_header
      %s12 = sphi 0, %s16
      %p13 = scmp.ge.s32.totalorder %s12, 4
      %s22 = sphi 0, %s24
      %s25 = sphi 0, %s22
      %s26 = sphi 0, %s25
      %s42 = sphi 0, %s26
      %s46 = sphi 0, %s46
      %s48 = sphi 0, %s46
      %s49 = sphi 0, %s48
      %s63 = sphi 0, %s49
      %s67 = sphi 0, %s67
      %s69 = sphi 0, %s67
      %s70 = sphi 0, %s69
      %s84 = sphi 0, %s70
      %s88 = sphi 0, %s88
      %s90 = sphi 0, %s88
      %s91 = sphi 0, %s90
      %s105 = sphi 0, %s91
      %s109 = sphi 0, %s109
      %s111 = sphi 0, %s109
      %s112 = sphi 0, %s111
      %s126 = sphi 0, %s112
      %s132 = sphi 0, %s134
      %s135 = sphi 0, %s132
      %s136 = sphi 0, %s135
      %s152 = sphi 0, %s136
    $region4: #{tpu_custom_call.1} parent=1 // loop_header_branch
      %15 = sbr.rel (%p13) target = $region8
    $region5: #{tpu_custom_call.1} parent=1 // loop_body
      %s17 = ssub.s32 %s12, 1
      %s18 = ssub.s32 %s12, 2
      %s19 = sadd.s32 %s12, 1
      %s20 = ssub.s32 %s12, %s19
      %p21 = scmp.eq.s32.totalorder %s20, 0
      %s23 = sadd.s32 %s22, 1
      %s24 = scalar_select %p21, %s22, %s23
      %p27 = pneg %p21
      %p28 = scmp.eq.s32.totalorder %s12, 1
      %p29 = por %p27, %p28
      %p30 = scmp.ne.s32.totalorder %s22, %s25
      %p31 = scmp.eq.s32.totalorder %s12, 0
      %p32 = por %p30, %p31
      %p33 = scmp.ne.s32.totalorder %s22, %s25
      %p34 = scmp.eq.s32.totalorder %s17, 1
      %p35 = por %p33, %p34
      %p36 = scmp.ne.s32.totalorder %s25, %s26
      %p37 = scmp.eq.s32.totalorder %s17, 0
      %p38 = por %p36, %p37
      %p39 = scmp.ne.s32.totalorder %s25, %s26
      %p40 = scmp.eq.s32.totalorder %s18, 1
      %p41 = por %p39, %p40
      %p43 = scmp.ne.s32.totalorder %s26, %s42
      %p44 = scmp.eq.s32.totalorder %s18, 0
      %p45 = por %p43, %p44
      %s47 = sadd.s32 %s46, 1
      %p50 = scmp.eq.s32.totalorder %s12, 1
      %p51 = scmp.ne.s32.totalorder %s46, %s48
      %p52 = scmp.eq.s32.totalorder %s12, 0
      %p53 = por %p51, %p52
      %p54 = scmp.ne.s32.totalorder %s46, %s48
      %p55 = scmp.eq.s32.totalorder %s17, 1
      %p56 = por %p54, %p55
      %p57 = scmp.ne.s32.totalorder %s48, %s49
      %p58 = scmp.eq.s32.totalorder %s17, 0
      %p59 = por %p57, %p58
      %p60 = scmp.ne.s32.totalorder %s48, %s49
      %p61 = scmp.eq.s32.totalorder %s18, 1
      %p62 = por %p60, %p61
      %p64 = scmp.ne.s32.totalorder %s49, %s63
      %p65 = scmp.eq.s32.totalorder %s18, 0
      %p66 = por %p64, %p65
      %s68 = sadd.s32 %s67, 1
      %p71 = scmp.eq.s32.totalorder %s12, 1
      %p72 = scmp.ne.s32.totalorder %s67, %s69
      %p73 = scmp.eq.s32.totalorder %s12, 0
      %p74 = por %p72, %p73
      %p75 = scmp.ne.s32.totalorder %s67, %s69
      %p76 = scmp.eq.s32.totalorder %s17, 1
      %p77 = por %p75, %p76
      %p78 = scmp.ne.s32.totalorder %s69, %s70
      %p79 = scmp.eq.s32.totalorder %s17, 0
      %p80 = por %p78, %p79
      %p81 = scmp.ne.s32.totalorder %s69, %s70
      %p82 = scmp.eq.s32.totalorder %s18, 1
      %p83 = por %p81, %p82
      %p85 = scmp.ne.s32.totalorder %s70, %s84
      %p86 = scmp.eq.s32.totalorder %s18, 0
      %p87 = por %p85, %p86
      %s89 = sadd.s32 %s88, 1
      %p92 = scmp.eq.s32.totalorder %s12, 1
      %p93 = scmp.ne.s32.totalorder %s88, %s90
      %p94 = scmp.eq.s32.totalorder %s12, 0
      %p95 = por %p93, %p94
      %p96 = scmp.ne.s32.totalorder %s88, %s90
      %p97 = scmp.eq.s32.totalorder %s17, 1
      %p98 = por %p96, %p97
      %p99 = scmp.ne.s32.totalorder %s90, %s91
      %p100 = scmp.eq.s32.totalorder %s17, 0
      %p101 = por %p99, %p100
      %p102 = scmp.ne.s32.totalorder %s90, %s91
      %p103 = scmp.eq.s32.totalorder %s18, 1
      %p104 = por %p102, %p103
      %p106 = scmp.ne.s32.totalorder %s91, %s105
      %p107 = scmp.eq.s32.totalorder %s18, 0
      %p108 = por %p106, %p107
      %s110 = sadd.s32 %s109, 1
      %p113 = scmp.eq.s32.totalorder %s12, 1
      %p114 = scmp.ne.s32.totalorder %s109, %s111
      %p115 = scmp.eq.s32.totalorder %s12, 0
      %p116 = por %p114, %p115
      %p117 = scmp.ne.s32.totalorder %s109, %s111
      %p118 = scmp.eq.s32.totalorder %s17, 1
      %p119 = por %p117, %p118
      %p120 = scmp.ne.s32.totalorder %s111, %s112
      %p121 = scmp.eq.s32.totalorder %s17, 0
      %p122 = por %p120, %p121
      %p123 = scmp.ne.s32.totalorder %s111, %s112
      %p124 = scmp.eq.s32.totalorder %s18, 1
      %p125 = por %p123, %p124
      %p127 = scmp.ne.s32.totalorder %s112, %s126
      %p128 = scmp.eq.s32.totalorder %s18, 0
      %p129 = por %p127, %p128
      %s130 = ssub.s32 %s12, %s19
      %p131 = scmp.eq.s32.totalorder %s130, 0
      %s133 = sadd.s32 %s132, 1
      %s134 = scalar_select %p131, %s132, %s133
      %p137 = pneg %p131
      %p138 = scmp.eq.s32.totalorder %s12, 1
      %p139 = por %p137, %p138
      %p140 = scmp.ne.s32.totalorder %s132, %s135
      %p141 = scmp.eq.s32.totalorder %s12, 0
      %p142 = por %p140, %p141
      %p143 = scmp.ne.s32.totalorder %s132, %s135
      %p144 = scmp.eq.s32.totalorder %s17, 1
      %p145 = por %p143, %p144
      %p146 = scmp.ne.s32.totalorder %s135, %s136
      %p147 = scmp.eq.s32.totalorder %s17, 0
      %p148 = por %p146, %p147
      %p149 = scmp.ne.s32.totalorder %s135, %s136
      %p150 = scmp.eq.s32.totalorder %s18, 1
      %p151 = por %p149, %p150
      %p153 = scmp.ne.s32.totalorder %s136, %s152
      %p154 = scmp.eq.s32.totalorder %s18, 0
      %p155 = por %p153, %p154
      %p156 = scmp.le.s32.totalorder 1, %s12
      %p157 = scmp.lt.s32.totalorder %s12, 3
      %p158 = pnand %p156, %p157
      %p159 = pneg %p158
      // Predicated region
      $region9: #{tpu_custom_call.1} parent=5 // pred_check
        _
      $region10: #{tpu_custom_call.1} parent=5 // pred_check_branch
        %161 = sbr.rel (%p158) target = $region12
      $region11: #{tpu_custom_call.1} parent=5 // pred_region
        %s162 = ssub.s32 %s12, 1
        // Predicated region
        $region13: #{tpu_custom_call.1} parent=11 // pred_check
          %p163 = pneg %p59
        $region14: #{tpu_custom_call.1} parent=11 // pred_check_branch
          %165 = sbr.rel (%p163) target = $region16
        $region15: #{tpu_custom_call.1} parent=11 // pred_region
          _
        $region16: #{tpu_custom_call.1} parent=11 // pred_fallthru
          _
        // Predicated region
        $region17: #{tpu_custom_call.1} parent=11 // pred_check
          %p166 = pneg %p80
        $region18: #{tpu_custom_call.1} parent=11 // pred_check_branch
          %168 = sbr.rel (%p166) target = $region20
        $region19: #{tpu_custom_call.1} parent=11 // pred_region
          _
        $region20: #{tpu_custom_call.1} parent=11 // pred_fallthru
          _
        // Predicated region
        $region21: #{tpu_custom_call.1} parent=11 // pred_check
          %p169 = pneg %p101
        $region22: #{tpu_custom_call.1} parent=11 // pred_check_branch
          %171 = sbr.rel (%p169) target = $region24
        $region23: #{tpu_custom_call.1} parent=11 // pred_region
          %173 = vsyncadd [#allocation3], 0
          %s175 = sshll.u32 %s3, 4
          %s176 = int_to_ptr.vmem [resolvable:$true] %s175
          %178 = dma.vmem_to_smem %s176, 16, [#allocation2], [#allocation3]
        $region24: #{tpu_custom_call.1} parent=11 // pred_fallthru
          _
        // Predicated region
        $region25: #{tpu_custom_call.1} parent=11 // pred_check
          %p179 = pneg %p122
        $region26: #{tpu_custom_call.1} parent=11 // pred_check_branch
          %181 = sbr.rel (%p179) target = $region28
        $region27: #{tpu_custom_call.1} parent=11 // pred_region
          _
        $region28: #{tpu_custom_call.1} parent=11 // pred_fallthru
          _
      $region12: #{tpu_custom_call.1} parent=5 // pred_fallthru
        _
      %p182 = scmp.lt.s32.totalorder %s12, 2
      // Predicated region
      $region29: #{tpu_custom_call.1} parent=5 // pred_check
        %p183 = pneg %p182
      $region30: #{tpu_custom_call.1} parent=5 // pred_check_branch
        %185 = sbr.rel (%p183) target = $region32
      $region31: #{tpu_custom_call.1} parent=5 // pred_region
        // Predicated region
        $region33: #{tpu_custom_call.1} parent=31 // pred_check
          %p186 = pneg %p32
        $region34: #{tpu_custom_call.1} parent=31 // pred_check_branch
          %188 = sbr.rel (%p186) target = $region36
        $region35: #{tpu_custom_call.1} parent=31 // pred_region
          %s189 = smul.u32 2, %s12
          %p190 = scmp.lt.s32.totalorder %s189, 3
          %s191 = scalar_select %p190, %s189, 3
          %s192 = smul.addr %s191, 8
          %s193 = smul.addr %s192, 8
          %s194 = scalar_lea.vmem %s0, %s193
          %s195 = smul.u32 2, %s12
        $region36: #{tpu_custom_call.1} parent=31 // pred_fallthru
          _
      $region32: #{tpu_custom_call.1} parent=5 // pred_fallthru
        _
      %p196 = scmp.le.s32.totalorder 1, %s12
      %p197 = scmp.lt.s32.totalorder %s12, 3
      %p198 = pnand %p196, %p197
      %p199 = pneg %p198
      // Predicated region
      $region37: #{tpu_custom_call.1} parent=5 // pred_check
        _
      $region38: #{tpu_custom_call.1} parent=5 // pred_check_branch
        %201 = sbr.rel (%p198) target = $region40
      $region39: #{tpu_custom_call.1} parent=5 // pred_region
        %s202 = ssub.s32 %s12, 1
        // Predicated region
        $region41: #{tpu_custom_call.1} parent=39 // pred_check
          %p203 = pneg %p101
        $region42: #{tpu_custom_call.1} parent=39 // pred_check_branch
          %205 = sbr.rel (%p203) target = $region44
        $region43: #{tpu_custom_call.1} parent=39 // pred_region
          %207 = dma.done [#allocation3], 16
        $region44: #{tpu_custom_call.1} parent=39 // pred_fallthru
          _
        %208 = sfence
        %s209 = smul.u32 2, %s17
        %p210 = scmp.lt.s32.totalorder %s209, 3
        %s211 = scalar_select %p210, %s209, 3
        %s212 = smul.addr %s211, 8
        %s213 = smul.addr %s212, 8
        %s214 = scalar_lea.vmem %s0, %s213
        %p215 = pneg %p38
        %p216 = pneg %p35
        %p217 = pneg %p59
        %p218 = pneg %p56
        %p219 = pneg %p80
        %p220 = pneg %p77
        %p221 = pneg %p101
        %p222 = pneg %p98
        %p223 = pneg %p122
        %p224 = pneg %p119
        %p225 = pneg %p148
        %p226 = pneg %p145
        %s227 = smul.u32 2, %s17
        %p228 = scmp.lt.s32.totalorder %s227, 3
        %s229 = scalar_select %p228, %s227, 3
        %s230 = smul.addr %s229, 8
        %s231 = smul.addr %s230, 8
        %s232 = scalar_lea.vmem %s5, %s231
        %s233 = smul.u32 2, %s17
        %p234 = scmp.lt.s32.totalorder %s233, 3
        %s235 = scalar_select %p234, %s233, 3
        %s236 = smul.addr %s235, 8
        %s237 = smul.addr %s236, 8
        %s238 = scalar_lea.vmem %s0, %s237
        %s239 = smul.u32 2, %s17
        %s240 = smul.u32 2, %s17
        %p241 = scmp.lt.s32.totalorder %s240, 3
        %s242 = scalar_select %p241, %s240, 3
        %s243 = smul.addr %s242, 8
        %s244 = smul.addr %s243, 8
        %s245 = scalar_lea.vmem %s5, %s244
        %s246 = smul.u32 2, %s17
        %v248 = vld [vmem:[%s238] sm:$0xff]
        %v249 = vld [vmem:[%s238 + $0x8] sm:$0xff]
        %v250 = vld [vmem:[%s238 + $0x10] sm:$0xff]
        %v251 = vld [vmem:[%s238 + $0x18] sm:$0xff]
        %v252 = vld [vmem:[%s238 + $0x20] sm:$0xff]
        %v253 = vld [vmem:[%s238 + $0x28] sm:$0xff]
        %v254 = vld [vmem:[%s238 + $0x30] sm:$0xff]
        %v255 = vld [vmem:[%s238 + $0x38] sm:$0xff]
        %v256 = vld [vmem:[%s238 + $0x40] sm:$0xff]
        %v257 = vld [vmem:[%s238 + $0x48] sm:$0xff]
        %v258 = vld [vmem:[%s238 + $0x50] sm:$0xff]
        %v259 = vld [vmem:[%s238 + $0x58] sm:$0xff]
        %v260 = vld [vmem:[%s238 + $0x60] sm:$0xff]
        %v261 = vld [vmem:[%s238 + $0x68] sm:$0xff]
        %v262 = vld [vmem:[%s238 + $0x70] sm:$0xff]
        %v263 = vld [vmem:[%s238 + $0x78] sm:$0xff]
        %v264 = vpack.c.bf16 %v248, %v248
        %v265 = vpack.c.bf16 %v249, %v249
        %v266 = vpack.c.bf16 %v250, %v250
        %v267 = vpack.c.bf16 %v251, %v251
        %v268 = vpack.c.bf16 %v252, %v252
        %v269 = vpack.c.bf16 %v253, %v253
        %v270 = vpack.c.bf16 %v254, %v254
        %v271 = vpack.c.bf16 %v255, %v255
        %v272 = vpack.c.bf16 %v256, %v256
        %v273 = vpack.c.bf16 %v257, %v257
        %v274 = vpack.c.bf16 %v258, %v258
        %v275 = vpack.c.bf16 %v259, %v259
        %v276 = vpack.c.bf16 %v260, %v260
        %v277 = vpack.c.bf16 %v261, %v261
        %v278 = vpack.c.bf16 %v262, %v262
        %v279 = vpack.c.bf16 %v263, %v263
        %v280 = vld [vmem:[%s1] sm:$0xf]
        %v281 = vld [vmem:[%s1 + $0x4] sm:$0xf]
        %v282 = vld [vmem:[%s1 + $0x8] sm:$0xf]
        %v283 = vld [vmem:[%s1 + $0xc] sm:$0xf]
        %v284 = vld [vmem:[%s1 + $0x10] sm:$0xf]
        %v285 = vld [vmem:[%s1 + $0x14] sm:$0xf]
        %v286 = vld [vmem:[%s1 + $0x18] sm:$0xf]
        %v287 = vld [vmem:[%s1 + $0x1c] sm:$0xf]
        %v288 = vld [vmem:[%s1 + $0x20] sm:$0xf]
        %v289 = vld [vmem:[%s1 + $0x24] sm:$0xf]
        %v290 = vld [vmem:[%s1 + $0x28] sm:$0xf]
        %v291 = vld [vmem:[%s1 + $0x2c] sm:$0xf]
        %v292 = vld [vmem:[%s1 + $0x30] sm:$0xf]
        %v293 = vld [vmem:[%s1 + $0x34] sm:$0xf]
        %v294 = vld [vmem:[%s1 + $0x38] sm:$0xf]
        %v295 = vld [vmem:[%s1 + $0x3c] sm:$0xf]
        %v296 = vld [vmem:[%s1 + $0x40] sm:$0xf]
        %v297 = vld [vmem:[%s2] sm:$0xff]
        %v298 = vld [vmem:[%s2 + $0x8] sm:$0xff]
        %v299 = vld [vmem:[%s2 + $0x10] sm:$0xff]
        %v300 = vld [vmem:[%s2 + $0x18] sm:$0xff]
        %v301 = vld [vmem:[%s2 + $0x20] sm:$0xff]
        %v302 = vld [vmem:[%s2 + $0x28] sm:$0xff]
        %v303 = vld [vmem:[%s2 + $0x30] sm:$0xff]
        %v304 = vld [vmem:[%s2 + $0x38] sm:$0xff]
        %v305 = vld [vmem:[%s2 + $0x40] sm:$0xff]
        %v306 = vld [vmem:[%s2 + $0x48] sm:$0xff]
        %v307 = vld [vmem:[%s2 + $0x50] sm:$0xff]
        %v308 = vld [vmem:[%s2 + $0x58] sm:$0xff]
        %v309 = vld [vmem:[%s2 + $0x60] sm:$0xff]
        %v310 = vld [vmem:[%s2 + $0x68] sm:$0xff]
        %v311 = vld [vmem:[%s2 + $0x70] sm:$0xff]
        %v312 = vld [vmem:[%s2 + $0x78] sm:$0xff]
        %v313 = vld [vmem:[%s2 + $0x80] sm:$0xff]
        %315 = vset.pattern.permute.xlu0 0
        %316 = vperm.xlu0 %315, %v297
        %v317 = vpop.permute.xlu0 %316
        %320 = vset.pattern.permute.xlu0 0
        %321 = vperm.xlu0 %320, %v298
        %v322 = vpop.permute.xlu0 %321
        %325 = vset.pattern.permute.xlu0 0
        %326 = vperm.xlu0 %325, %v299
        %v327 = vpop.permute.xlu0 %326
        %330 = vset.pattern.permute.xlu0 0
        %331 = vperm.xlu0 %330, %v300
        %v332 = vpop.permute.xlu0 %331
        %335 = vset.pattern.permute.xlu0 0
        %336 = vperm.xlu0 %335, %v301
        %v337 = vpop.permute.xlu0 %336
        %340 = vset.pattern.permute.xlu0 0
        %341 = vperm.xlu0 %340, %v302
        %v342 = vpop.permute.xlu0 %341
        %345 = vset.pattern.permute.xlu0 0
        %346 = vperm.xlu0 %345, %v303
        %v347 = vpop.permute.xlu0 %346
        %350 = vset.pattern.permute.xlu0 0
        %351 = vperm.xlu0 %350, %v304
        %v352 = vpop.permute.xlu0 %351
        %355 = vset.pattern.permute.xlu0 0
        %356 = vperm.xlu0 %355, %v305
        %v357 = vpop.permute.xlu0 %356
        %360 = vset.pattern.permute.xlu0 0
        %361 = vperm.xlu0 %360, %v306
        %v362 = vpop.permute.xlu0 %361
        %365 = vset.pattern.permute.xlu0 0
        %366 = vperm.xlu0 %365, %v307
        %v367 = vpop.permute.xlu0 %366
        %370 = vset.pattern.permute.xlu0 0
        %371 = vperm.xlu0 %370, %v308
        %v372 = vpop.permute.xlu0 %371
        %375 = vset.pattern.permute.xlu0 0
        %376 = vperm.xlu0 %375, %v309
        %v377 = vpop.permute.xlu0 %376
        %380 = vset.pattern.permute.xlu0 0
        %381 = vperm.xlu0 %380, %v310
        %v382 = vpop.permute.xlu0 %381
        %385 = vset.pattern.permute.xlu0 0
        %386 = vperm.xlu0 %385, %v311
        %v387 = vpop.permute.xlu0 %386
        %390 = vset.pattern.permute.xlu0 0
        %391 = vperm.xlu0 %390, %v312
        %v392 = vpop.permute.xlu0 %391
        %395 = vset.pattern.permute.xlu0 0
        %396 = vperm.xlu0 %395, %v313
        %v397 = vpop.permute.xlu0 %396
        %v416 = vunpack.c.l.b16 %v280
        %v417 = vunpack.c.l.b16 %v281
        %v418 = vunpack.c.l.b16 %v282
        %v419 = vunpack.c.l.b16 %v283
        %v420 = vunpack.c.l.b16 %v284
        %v421 = vunpack.c.l.b16 %v285
        %v422 = vunpack.c.l.b16 %v286
        %v423 = vunpack.c.l.b16 %v287
        %v424 = vunpack.c.l.b16 %v288
        %v425 = vunpack.c.l.b16 %v289
        %v426 = vunpack.c.l.b16 %v290
        %v427 = vunpack.c.l.b16 %v291
        %v428 = vunpack.c.l.b16 %v292
        %v429 = vunpack.c.l.b16 %v293
        %v430 = vunpack.c.l.b16 %v294
        %v431 = vunpack.c.l.b16 %v295
        %v432 = vunpack.c.l.b16 %v296
        %v433 = vpack.c.b16 %v417, %v416
        %v434 = vpack.c.b16 %v419, %v418
        %v435 = vpack.c.b16 %v421, %v420
        %v436 = vpack.c.b16 %v423, %v422
        %v437 = vpack.c.b16 %v425, %v424
        %v438 = vpack.c.b16 %v427, %v426
        %v439 = vpack.c.b16 %v429, %v428
        %v440 = vpack.c.b16 %v431, %v430
        %v441 = vpack.c.b16 %v432, %v432
        %v450 = vunpack.c.l.b16 %v264
        %v451 = vunpack.c.l.b16 %v265
        %v452 = vunpack.c.l.b16 %v266
        %v453 = vunpack.c.l.b16 %v267
        %v454 = vunpack.c.l.b16 %v268
        %v455 = vunpack.c.l.b16 %v269
        %v456 = vunpack.c.l.b16 %v270
        %v457 = vunpack.c.l.b16 %v271
        %v458 = vpack.c.b16 %v451, %v450
        %v459 = vpack.c.b16 %v453, %v452
        %v460 = vpack.c.b16 %v455, %v454
        %v461 = vpack.c.b16 %v457, %v456
        %vm466 = vcmask 523264
        %v468 = vsel %vm466, %v433, 0
        %v471 = vsel %vm466, %v434, 0
        %v474 = vsel %vm466, %v435, 0
        %v477 = vsel %vm466, %v436, 0
        %v480 = vsel %vm466, %v437, 0
        %v483 = vsel %vm466, %v438, 0
        %v486 = vsel %vm466, %v439, 0
        %v489 = vsel %vm466, %v440, 0
        %v492 = vsel %vm466, %v441, 0
        %494 = vmatpush.bf16.msra.mxu0 0
        %495 = vmatpush.bf16.msra.mxu0 0
        %496 = vmatpush.bf16.msra.mxu0 0
        %497 = vmatpush.bf16.msra.mxu0 0
        %498 = vmatpush.bf16.msra.mxu0 %v461
        %499 = vmatpush.bf16.msra.mxu0 %v460
        %500 = vmatpush.bf16.msra.mxu0 %v459
        %501 = vmatpush.bf16.msra.mxu0 %v458
        %502 = vmatmul.bf16.gmra.mxu0 %v468
        %v503 = vpop.f32.mrf.mxu0
        %v504 = vadd.f32 %v317, %v503
        %v505 = vpop.f32.mrf.mxu0
        %v506 = vadd.f32 %v322, %v505
        %507 = vmatmul.bf16.gmra.mxu0 %v471
        %v508 = vpop.f32.mrf.mxu0
        %v509 = vadd.f32 %v327, %v508
        %v510 = vpop.f32.mrf.mxu0
        %v511 = vadd.f32 %v332, %v510
        %512 = vmatmul.bf16.gmra.mxu0 %v474
        %v513 = vpop.f32.mrf.mxu0
        %v514 = vadd.f32 %v337, %v513
        %v515 = vpop.f32.mrf.mxu0
        %v516 = vadd.f32 %v342, %v515
        %517 = vmatmul.bf16.gmra.mxu0 %v477
        %v518 = vpop.f32.mrf.mxu0
        %v519 = vadd.f32 %v347, %v518
        %v520 = vpop.f32.mrf.mxu0
        %v521 = vadd.f32 %v352, %v520
        %522 = vmatmul.bf16.gmra.mxu0 %v480
        %v523 = vpop.f32.mrf.mxu0
        %v524 = vadd.f32 %v357, %v523
        %v525 = vpop.f32.mrf.mxu0
        %v526 = vadd.f32 %v362, %v525
        %527 = vmatmul.bf16.gmra.mxu0 %v483
        %v528 = vpop.f32.mrf.mxu0
        %v529 = vadd.f32 %v367, %v528
        %v530 = vpop.f32.mrf.mxu0
        %v531 = vadd.f32 %v372, %v530
        %532 = vmatmul.bf16.gmra.mxu0 %v486
        %v533 = vpop.f32.mrf.mxu0
        %v534 = vadd.f32 %v377, %v533
        %v535 = vpop.f32.mrf.mxu0
        %v536 = vadd.f32 %v382, %v535
        %537 = vmatmul.bf16.gmra.mxu0 %v489
        %v538 = vpop.f32.mrf.mxu0
        %v539 = vadd.f32 %v387, %v538
        %v540 = vpop.f32.mrf.mxu0
        %v541 = vadd.f32 %v392, %v540
        %542 = vmatmul.bf16.gmra.mxu0 %v492
        %v543 = vpop.f32.mrf.mxu0
        %v544 = vadd.f32 %v397, %v543
        %v545 = vpop.f32.mrf.mxu0
        %546 = vdwg.mxu0
        %v555 = vunpack.c.l.b16 %v272
        %v556 = vunpack.c.l.b16 %v273
        %v557 = vunpack.c.l.b16 %v274
        %v558 = vunpack.c.l.b16 %v275
        %v559 = vunpack.c.l.b16 %v276
        %v560 = vunpack.c.l.b16 %v277
        %v561 = vunpack.c.l.b16 %v278
        %v562 = vunpack.c.l.b16 %v279
        %v563 = vpack.c.b16 %v556, %v555
        %v564 = vpack.c.b16 %v558, %v557
        %v565 = vpack.c.b16 %v560, %v559
        %v566 = vpack.c.b16 %v562, %v561
        %571 = vmatpush.bf16.msra.mxu0 0
        %572 = vmatpush.bf16.msra.mxu0 0
        %573 = vmatpush.bf16.msra.mxu0 0
        %574 = vmatpush.bf16.msra.mxu0 0
        %575 = vmatpush.bf16.msra.mxu0 %v566
        %576 = vmatpush.bf16.msra.mxu0 %v565
        %577 = vmatpush.bf16.msra.mxu0 %v564
        %578 = vmatpush.bf16.msra.mxu0 %v563
        %579 = vmatmul.bf16.gmra.mxu0 %v468
        %v580 = vpop.f32.mrf.mxu0
        %v581 = vadd.f32 %v317, %v580
        %v582 = vpop.f32.mrf.mxu0
        %v583 = vadd.f32 %v322, %v582
        %584 = vmatmul.bf16.gmra.mxu0 %v471
        %v585 = vpop.f32.mrf.mxu0
        %v586 = vadd.f32 %v327, %v585
        %v587 = vpop.f32.mrf.mxu0
        %v588 = vadd.f32 %v332, %v587
        %589 = vmatmul.bf16.gmra.mxu0 %v474
        %v590 = vpop.f32.mrf.mxu0
        %v591 = vadd.f32 %v337, %v590
        %v592 = vpop.f32.mrf.mxu0
        %v593 = vadd.f32 %v342, %v592
        %594 = vmatmul.bf16.gmra.mxu0 %v477
        %v595 = vpop.f32.mrf.mxu0
        %v596 = vadd.f32 %v347, %v595
        %v597 = vpop.f32.mrf.mxu0
        %v598 = vadd.f32 %v352, %v597
        %599 = vmatmul.bf16.gmra.mxu0 %v480
        %v600 = vpop.f32.mrf.mxu0
        %v601 = vadd.f32 %v357, %v600
        %v602 = vpop.f32.mrf.mxu0
        %v603 = vadd.f32 %v362, %v602
        %604 = vmatmul.bf16.gmra.mxu0 %v483
        %v605 = vpop.f32.mrf.mxu0
        %v606 = vadd.f32 %v367, %v605
        %v607 = vpop.f32.mrf.mxu0
        %v608 = vadd.f32 %v372, %v607
        %609 = vmatmul.bf16.gmra.mxu0 %v486
        %v610 = vpop.f32.mrf.mxu0
        %v611 = vadd.f32 %v377, %v610
        %v612 = vpop.f32.mrf.mxu0
        %v613 = vadd.f32 %v382, %v612
        %614 = vmatmul.bf16.gmra.mxu0 %v489
        %v615 = vpop.f32.mrf.mxu0
        %v616 = vadd.f32 %v387, %v615
        %v617 = vpop.f32.mrf.mxu0
        %v618 = vadd.f32 %v392, %v617
        %619 = vmatmul.bf16.gmra.mxu0 %v492
        %v620 = vpop.f32.mrf.mxu0
        %v621 = vadd.f32 %v397, %v620
        %v622 = vpop.f32.mrf.mxu0
        %623 = vdwg.mxu0
        %v624 = vpack.c.bf16 %v524, %v524
        %v625 = vpack.c.bf16 %v526, %v526
        %v626 = vpack.c.bf16 %v529, %v529
        %v627 = vpack.c.bf16 %v531, %v531
        %v628 = vpack.c.bf16 %v534, %v534
        %v629 = vpack.c.bf16 %v536, %v536
        %v630 = vpack.c.bf16 %v539, %v539
        %v631 = vpack.c.bf16 %v541, %v541
        %v632 = vpack.c.bf16 %v601, %v601
        %v633 = vpack.c.bf16 %v603, %v603
        %v634 = vpack.c.bf16 %v606, %v606
        %v635 = vpack.c.bf16 %v608, %v608
        %v636 = vpack.c.bf16 %v611, %v611
        %v637 = vpack.c.bf16 %v613, %v613
        %v638 = vpack.c.bf16 %v616, %v616
        %v639 = vpack.c.bf16 %v618, %v618
        %s640 = sld [smem:[#allocation2]]
        %s641 = sld [smem:[#allocation2 + $0x1]]
        %s642 = sld [smem:[#allocation2 + $0x2]]
        %s643 = sld [smem:[#allocation2 + $0x3]]
        %v644 = vpack.c.bf16 %v504, %v504
        %v645 = vpack.c.bf16 %v506, %v506
        %v646 = vpack.c.bf16 %v509, %v509
        %v647 = vpack.c.bf16 %v511, %v511
        %v648 = vpack.c.bf16 %v514, %v514
        %v649 = vpack.c.bf16 %v516, %v516
        %v650 = vpack.c.bf16 %v519, %v519
        %v651 = vpack.c.bf16 %v521, %v521
        %v652 = vpack.c.bf16 %v581, %v581
        %v653 = vpack.c.bf16 %v583, %v583
        %v654 = vpack.c.bf16 %v586, %v586
        %v655 = vpack.c.bf16 %v588, %v588
        %v656 = vpack.c.bf16 %v591, %v591
        %v657 = vpack.c.bf16 %v593, %v593
        %v658 = vpack.c.bf16 %v596, %v596
        %v659 = vpack.c.bf16 %v598, %v598
        %v676 = vunpack.c.l.b16 %v644
        %v677 = vunpack.c.l.b16 %v645
        %v678 = vunpack.c.l.b16 %v646
        %v679 = vunpack.c.l.b16 %v647
        %v680 = vunpack.c.l.b16 %v648
        %v681 = vunpack.c.l.b16 %v649
        %v682 = vunpack.c.l.b16 %v650
        %v683 = vunpack.c.l.b16 %v651
        %v684 = vunpack.c.l.b16 %v652
        %v685 = vunpack.c.l.b16 %v653
        %v686 = vunpack.c.l.b16 %v654
        %v687 = vunpack.c.l.b16 %v655
        %v688 = vunpack.c.l.b16 %v656
        %v689 = vunpack.c.l.b16 %v657
        %v690 = vunpack.c.l.b16 %v658
        %v691 = vunpack.c.l.b16 %v659
        %v692 = vpack.c.b16 %v677, %v676
        %v693 = vpack.c.b16 %v679, %v678
        %v694 = vpack.c.b16 %v681, %v680
        %v695 = vpack.c.b16 %v683, %v682
        %v696 = vpack.c.b16 %v685, %v684
        %v697 = vpack.c.b16 %v687, %v686
        %v698 = vpack.c.b16 %v689, %v688
        %v699 = vpack.c.b16 %v691, %v690
        %700 = vrot.lane.b32.xlu0 %v692, 16
        %v701 = vpop.permute.xlu0 %700
        %702 = vrot.lane.b32.xlu0 %v693, 16
        %v703 = vpop.permute.xlu0 %702
        %704 = vrot.lane.b32.xlu0 %v694, 16
        %v705 = vpop.permute.xlu0 %704
        %706 = vrot.lane.b32.xlu0 %v695, 16
        %v707 = vpop.permute.xlu0 %706
        %708 = vrot.lane.b32.xlu0 %v696, 16
        %v709 = vpop.permute.xlu0 %708
        %710 = vrot.lane.b32.xlu0 %v697, 16
        %v711 = vpop.permute.xlu0 %710
        %712 = vrot.lane.b32.xlu0 %v698, 16
        %v713 = vpop.permute.xlu0 %712
        %714 = vrot.lane.b32.xlu0 %v699, 16
        %v715 = vpop.permute.xlu0 %714
        %vm716 = vcmask 130048
        %v719 = vsel %vm716, %v458, %v701
        %v723 = vsel %vm716, %v459, %v703
        %v727 = vsel %vm716, %v460, %v705
        %v731 = vsel %vm716, %v461, %v707
        %v735 = vsel %vm716, %v563, %v709
        %v739 = vsel %vm716, %v564, %v711
        %v743 = vsel %vm716, %v565, %v713
        %v747 = vsel %vm716, %v566, %v715
        %749 = vxpose.xlu0.c.b16.start [1/8] %v458, 128
        %750 = vxpose.xlu0.c.b16.cont [2/8] %v459, 128
        %751 = vxpose.xlu0.c.b16.cont [3/8] %v460, 128
        %752 = vxpose.xlu0.c.b16.cont [4/8] %v461, 128
        %753 = vxpose.xlu0.c.b16.cont [5/8] 0, 128
        %754 = vxpose.xlu0.c.b16.cont [6/8] 0, 128
        %755 = vxpose.xlu0.c.b16.cont [7/8] 0, 128
        %756 = vxpose.xlu0.c.b16.end [8/8] 0, 128
        %v757 = vpop.trf.xlu0
        %v758 = vpop.trf.xlu0
        %v759 = vpop.trf.xlu0
        %v760 = vpop.trf.xlu0
        %v761 = vpop.trf.xlu0
        %v762 = vpop.trf.xlu0
        %v763 = vpop.trf.xlu0
        %v764 = vpop.trf.xlu0
        %v766 = vsel %vm466, %v757, 0
        %768 = vmatpush.bf16.msra.mxu0 0
        %769 = vmatpush.bf16.msra.mxu0 0
        %770 = vmatpush.bf16.msra.mxu0 0
        %771 = vmatpush.bf16.msra.mxu0 0
        %772 = vmatpush.bf16.msra.mxu0 %v731
        %773 = vmatpush.bf16.msra.mxu0 %v727
        %774 = vmatpush.bf16.msra.mxu0 %v723
        %775 = vmatpush.bf16.msra.mxu0 %v719
        %776 = vmatmul.bf16.gmra.mxu0 %v766
        %v777 = vpop.f32.mrf.mxu0
        %v778 = vadd.f32 0.0, %v777
        %v779 = vpop.f32.mrf.mxu0
        %v780 = vadd.f32 0.0, %v779
        %781 = vdwg.mxu0
        %782 = vxpose.xlu0.c.b16.start [1/8] %v563, 128
        %783 = vxpose.xlu0.c.b16.cont [2/8] %v564, 128
        %784 = vxpose.xlu0.c.b16.cont [3/8] %v565, 128
        %785 = vxpose.xlu0.c.b16.cont [4/8] %v566, 128
        %786 = vxpose.xlu0.c.b16.cont [5/8] 0, 128
        %787 = vxpose.xlu0.c.b16.cont [6/8] 0, 128
        %788 = vxpose.xlu0.c.b16.cont [7/8] 0, 128
        %789 = vxpose.xlu0.c.b16.end [8/8] 0, 128
        %v790 = vpop.trf.xlu0
        %v791 = vpop.trf.xlu0
        %v792 = vpop.trf.xlu0
        %v793 = vpop.trf.xlu0
        %v794 = vpop.trf.xlu0
        %v795 = vpop.trf.xlu0
        %v796 = vpop.trf.xlu0
        %v797 = vpop.trf.xlu0
        %v799 = vsel %vm466, %v790, 0
        %801 = vmatpush.bf16.msra.mxu0 0
        %802 = vmatpush.bf16.msra.mxu0 0
        %803 = vmatpush.bf16.msra.mxu0 0
        %804 = vmatpush.bf16.msra.mxu0 0
        %805 = vmatpush.bf16.msra.mxu0 %v747
        %806 = vmatpush.bf16.msra.mxu0 %v743
        %807 = vmatpush.bf16.msra.mxu0 %v739
        %808 = vmatpush.bf16.msra.mxu0 %v735
        %809 = vmatmul.bf16.gmra.mxu0 %v799
        %v810 = vpop.f32.mrf.mxu0
        %v811 = vadd.f32 0.0, %v810
        %v812 = vpop.f32.mrf.mxu0
        %v813 = vadd.f32 0.0, %v812
        %814 = vdwg.mxu0
        %v815 = vsel %vm716, %v778, -inf
        %816 = vmax.xlane.f32.xlu0 %v815
        %v817 = vpop.xlane.xlu0 %816
        %v818 = vsel %vm716, %v780, -inf
        %819 = vmax.xlane.f32.xlu0 %v818
        %v820 = vpop.xlane.xlu0 %819
        %v821 = vsel %vm716, %v811, -inf
        %822 = vmax.xlane.f32.xlu0 %v821
        %v823 = vpop.xlane.xlu0 %822
        %v824 = vsel %vm716, %v813, -inf
        %825 = vmax.xlane.f32.xlu0 %v824
        %v826 = vpop.xlane.xlu0 %825
        %v827 = vsub.f32 %v778, %v817
        %v828 = vsub.f32 %v780, %v820
        %v829 = vsub.f32 %v811, %v823
        %v830 = vsub.f32 %v813, %v826
        %v831 = vmul.f32 %v827, 1.442695
        %v832 = vpow.pop %v831
        %v833 = vmul.f32 %v828, 1.442695
        %v834 = vpow.pop %v833
        %v835 = vmul.f32 %v829, 1.442695
        %v836 = vpow.pop %v835
        %v837 = vmul.f32 %v830, 1.442695
        %v838 = vpow.pop %v837
        %v839 = vsel %vm716, %v832, 0.0
        %840 = vadd.xlane.f32.xlu0 %v839
        %v841 = vpop.xlane.xlu0 %840
        %v842 = vsel %vm716, %v834, 0.0
        %843 = vadd.xlane.f32.xlu0 %v842
        %v844 = vpop.xlane.xlu0 %843
        %v845 = vsel %vm716, %v836, 0.0
        %846 = vadd.xlane.f32.xlu0 %v845
        %v847 = vpop.xlane.xlu0 %846
        %v848 = vsel %vm716, %v838, 0.0
        %849 = vadd.xlane.f32.xlu0 %v848
        %v850 = vpop.xlane.xlu0 %849
        %v851 = vrcp.pop %v841
        %v852 = vrcp.pop %v844
        %v853 = vrcp.pop %v847
        %v854 = vrcp.pop %v850
        %v855 = vmul.f32 %v832, %v851
        %v856 = vmul.f32 %v834, %v852
        %v857 = vmul.f32 %v836, %v853
        %v858 = vmul.f32 %v838, %v854
        %v859 = vperm.slane %v544, 0
        %v860 = vlaneseq
        %v861 = vshrl.u32 %v860, 7
        %863 = vset.pattern.permute.xlu0 %v861
        %864 = vperm.xlu0 %863, %v859
        %v865 = vpop.permute.xlu0 %864
        %v866 = vlaneseq
        %v867 = vshrl.u32 %v866, 7
        %v868 = vadd.s32 %v867, 8
        %869 = vset.pattern.permute.xlu0 %v868
        %870 = vperm.xlu0 %869, %v859
        %v871 = vpop.permute.xlu0 %870
        %v872 = vperm.slane %v621, 0
        %v873 = vlaneseq
        %v874 = vshrl.u32 %v873, 7
        %876 = vset.pattern.permute.xlu0 %v874
        %877 = vperm.xlu0 %876, %v872
        %v878 = vpop.permute.xlu0 %877
        %v879 = vlaneseq
        %v880 = vshrl.u32 %v879, 7
        %v881 = vadd.s32 %v880, 8
        %882 = vset.pattern.permute.xlu0 %v881
        %883 = vperm.xlu0 %882, %v872
        %v884 = vpop.permute.xlu0 %883
        %v885 = vadd.f32 %v778, %v865
        %v886 = vadd.f32 %v780, %v871
        %v887 = vadd.f32 %v811, %v878
        %v888 = vadd.f32 %v813, %v884
        %v889 = vperm.slane %v544, 1
        %v890 = vperm.slane %v621, 1
        %893 = vrot.lane.b32.xlu0 %v889, 16
        %v894 = vpop.permute.xlu0 %893
        %895 = vrot.lane.b32.xlu0 %v890, 16
        %v896 = vpop.permute.xlu0 %895
        %v899 = vadd.f32 %v885, %v894
        %v900 = vadd.f32 %v886, %v894
        %v901 = vadd.f32 %v887, %v896
        %v902 = vadd.f32 %v888, %v896
        %v903 = vstv %s643
        %v904 = vadd.f32 %v899, %v903
        %v905 = vadd.f32 %v900, %v903
        %v906 = vadd.f32 %v901, %v903
        %v907 = vadd.f32 %v902, %v903
        %v908 = vmul.f32 %v904, 0.17677669
        %v909 = vmul.f32 %v905, 0.17677669
        %v910 = vmul.f32 %v906, 0.17677669
        %v911 = vmul.f32 %v907, 0.17677669
        %vm912 = vcmask 261248
        %v913 = vsel %vm912, %v908, -inf
        %914 = vmax.xlane.f32.xlu0 %v913
        %v915 = vpop.xlane.xlu0 %914
        %v916 = vsel %vm912, %v909, -inf
        %917 = vmax.xlane.f32.xlu0 %v916
        %v918 = vpop.xlane.xlu0 %917
        %v919 = vsel %vm912, %v910, -inf
        %920 = vmax.xlane.f32.xlu0 %v919
        %v921 = vpop.xlane.xlu0 %920
        %v922 = vsel %vm912, %v911, -inf
        %923 = vmax.xlane.f32.xlu0 %v922
        %v924 = vpop.xlane.xlu0 %923
        %v925 = vsub.f32 %v908, %v915
        %v926 = vsub.f32 %v909, %v918
        %v927 = vsub.f32 %v910, %v921
        %v928 = vsub.f32 %v911, %v924
        %v929 = vmul.f32 %v925, 1.442695
        %v930 = vpow.pop %v929
        %v931 = vmul.f32 %v926, 1.442695
        %v932 = vpow.pop %v931
        %v933 = vmul.f32 %v927, 1.442695
        %v934 = vpow.pop %v933
        %v935 = vmul.f32 %v928, 1.442695
        %v936 = vpow.pop %v935
        %941 = vrot.lane.b32.xlu0 %v930, 112
        %v942 = vpop.permute.xlu0 %941
        %943 = vrot.lane.b32.xlu0 %v932, 112
        %v944 = vpop.permute.xlu0 %943
        %945 = vrot.lane.b32.xlu0 %v934, 112
        %v946 = vpop.permute.xlu0 %945
        %947 = vrot.lane.b32.xlu0 %v936, 112
        %v948 = vpop.permute.xlu0 %947
        %v953 = vsel %vm716, %v942, 0.0
        %954 = vadd.xlane.f32.xlu0 %v953
        %v955 = vpop.xlane.xlu0 %954
        %v956 = vsel %vm716, %v944, 0.0
        %957 = vadd.xlane.f32.xlu0 %v956
        %v958 = vpop.xlane.xlu0 %957
        %v959 = vsel %vm716, %v946, 0.0
        %960 = vadd.xlane.f32.xlu0 %v959
        %v961 = vpop.xlane.xlu0 %960
        %v962 = vsel %vm716, %v948, 0.0
        %963 = vadd.xlane.f32.xlu0 %v962
        %v964 = vpop.xlane.xlu0 %963
        %v965 = vrcp.pop %v955
        %v966 = vrcp.pop %v958
        %v967 = vrcp.pop %v961
        %v968 = vrcp.pop %v964
        %v969 = vmul.f32 %v930, %v965
        %v970 = vmul.f32 %v932, %v966
        %v971 = vmul.f32 %v934, %v967
        %v972 = vmul.f32 %v936, %v968
        %v973 = vstv %s640
        %v974 = vmul.f32 %v973, %v855
        %v975 = vmul.f32 %v973, %v856
        %v976 = vmul.f32 %v973, %v857
        %v977 = vmul.f32 %v973, %v858
        %v978 = vstv %s641
        %v979 = vmul.f32 %v978, %v969
        %v980 = vmul.f32 %v978, %v970
        %v981 = vmul.f32 %v978, %v971
        %v982 = vmul.f32 %v978, %v972
        %987 = vrot.lane.b32.xlu0 %v979, 112
        %v988 = vpop.permute.xlu0 %987
        %989 = vrot.lane.b32.xlu0 %v980, 112
        %v990 = vpop.permute.xlu0 %989
        %991 = vrot.lane.b32.xlu0 %v981, 112
        %v992 = vpop.permute.xlu0 %991
        %993 = vrot.lane.b32.xlu0 %v982, 112
        %v994 = vpop.permute.xlu0 %993
        %v999 = vadd.f32 %v974, %v988
        %v1000 = vadd.f32 %v975, %v990
        %v1001 = vadd.f32 %v976, %v992
        %v1002 = vadd.f32 %v977, %v994
        %v1003 = vstv %s642
        %v1004 = vadd.f32 %v999, %v1003
        %v1005 = vadd.f32 %v1000, %v1003
        %v1006 = vadd.f32 %v1001, %v1003
        %v1007 = vadd.f32 %v1002, %v1003
        %v1008 = vsel %vm716, %v1004, -inf
        %1009 = vmax.xlane.f32.xlu0 %v1008
        %v1010 = vpop.xlane.xlu0 %1009
        %v1011 = vsel %vm716, %v1005, -inf
        %1012 = vmax.xlane.f32.xlu0 %v1011
        %v1013 = vpop.xlane.xlu0 %1012
        %v1014 = vsel %vm716, %v1006, -inf
        %1015 = vmax.xlane.f32.xlu0 %v1014
        %v1016 = vpop.xlane.xlu0 %1015
        %v1017 = vsel %vm716, %v1007, -inf
        %1018 = vmax.xlane.f32.xlu0 %v1017
        %v1019 = vpop.xlane.xlu0 %1018
        %v1020 = vsub.f32 %v1004, %v1010
        %v1021 = vsub.f32 %v1005, %v1013
        %v1022 = vsub.f32 %v1006, %v1016
        %v1023 = vsub.f32 %v1007, %v1019
        %v1024 = vmul.f32 %v1020, 1.442695
        %v1025 = vpow.pop %v1024
        %v1026 = vmul.f32 %v1021, 1.442695
        %v1027 = vpow.pop %v1026
        %v1028 = vmul.f32 %v1022, 1.442695
        %v1029 = vpow.pop %v1028
        %v1030 = vmul.f32 %v1023, 1.442695
        %v1031 = vpow.pop %v1030
        %v1032 = vsel %vm716, %v1025, 0.0
        %1033 = vadd.xlane.f32.xlu0 %v1032
        %v1034 = vpop.xlane.xlu0 %1033
        %v1035 = vsel %vm716, %v1027, 0.0
        %1036 = vadd.xlane.f32.xlu0 %v1035
        %v1037 = vpop.xlane.xlu0 %1036
        %v1038 = vsel %vm716, %v1029, 0.0
        %1039 = vadd.xlane.f32.xlu0 %v1038
        %v1040 = vpop.xlane.xlu0 %1039
        %v1041 = vsel %vm716, %v1031, 0.0
        %1042 = vadd.xlane.f32.xlu0 %v1041
        %v1043 = vpop.xlane.xlu0 %1042
        %v1044 = vrcp.pop %v1034
        %v1045 = vrcp.pop %v1037
        %v1046 = vrcp.pop %v1040
        %v1047 = vrcp.pop %v1043
        %v1048 = vmul.f32 %v1025, %v1044
        %v1049 = vmul.f32 %v1027, %v1045
        %v1050 = vmul.f32 %v1029, %v1046
        %v1051 = vmul.f32 %v1031, %v1047
        %v1052 = vpack.c.bf16 %v1048, %v1048
        %v1053 = vpack.c.bf16 %v1049, %v1049
        %v1054 = vpack.c.bf16 %v1050, %v1050
        %v1055 = vpack.c.bf16 %v1051, %v1051
        %v1064 = vunpack.c.l.b16 %v624
        %v1065 = vunpack.c.l.b16 %v625
        %v1066 = vunpack.c.l.b16 %v626
        %v1067 = vunpack.c.l.b16 %v627
        %v1068 = vunpack.c.l.b16 %v628
        %v1069 = vunpack.c.l.b16 %v629
        %v1070 = vunpack.c.l.b16 %v630
        %v1071 = vunpack.c.l.b16 %v631
        %v1072 = vpack.c.b16 %v1065, %v1064
        %v1073 = vpack.c.b16 %v1067, %v1066
        %v1074 = vpack.c.b16 %v1069, %v1068
        %v1075 = vpack.c.b16 %v1071, %v1070
        %v1078 = vunpack.c.l.b16 %v1052
        %v1079 = vunpack.c.l.b16 %v1053
        %v1080 = vpack.c.b16 %v1079, %v1078
        %v1083 = vsel %vm716, %v1072, 0
        %v1086 = vsel %vm716, %v1073, 0
        %v1089 = vsel %vm716, %v1074, 0
        %v1092 = vsel %vm716, %v1075, 0
        %1094 = vmatpush.bf16.msra.mxu0 0
        %1095 = vmatpush.bf16.msra.mxu0 0
        %1096 = vmatpush.bf16.msra.mxu0 0
        %1097 = vmatpush.bf16.msra.mxu0 0
        %1098 = vmatpush.bf16.msra.mxu0 0
        %1099 = vmatpush.bf16.msra.mxu0 0
        %1100 = vmatpush.bf16.msra.mxu0 0
        %1101 = vmatpush.bf16.msra.mxu0 %v1080
        %1102 = vmatmul.bf16.gmra.mxu0 %v1083
        %v1103 = vpop.f32.mrf.mxu0
        %v1104 = vadd.f32 0.0, %v1103
        %v1105 = vpop.f32.mrf.mxu0
        %v1106 = vadd.f32 0.0, %v1105
        %1107 = vmatmul.bf16.gmra.mxu0 %v1086
        %v1108 = vpop.f32.mrf.mxu0
        %v1109 = vadd.f32 0.0, %v1108
        %v1110 = vpop.f32.mrf.mxu0
        %v1111 = vadd.f32 0.0, %v1110
        %1112 = vmatmul.bf16.gmra.mxu0 %v1089
        %v1113 = vpop.f32.mrf.mxu0
        %v1114 = vadd.f32 0.0, %v1113
        %v1115 = vpop.f32.mrf.mxu0
        %v1116 = vadd.f32 0.0, %v1115
        %1117 = vmatmul.bf16.gmra.mxu0 %v1092
        %v1118 = vpop.f32.mrf.mxu0
        %v1119 = vadd.f32 0.0, %v1118
        %v1120 = vpop.f32.mrf.mxu0
        %v1121 = vadd.f32 0.0, %v1120
        %1122 = vdwg.mxu0
        %v1131 = vunpack.c.l.b16 %v632
        %v1132 = vunpack.c.l.b16 %v633
        %v1133 = vunpack.c.l.b16 %v634
        %v1134 = vunpack.c.l.b16 %v635
        %v1135 = vunpack.c.l.b16 %v636
        %v1136 = vunpack.c.l.b16 %v637
        %v1137 = vunpack.c.l.b16 %v638
        %v1138 = vunpack.c.l.b16 %v639
        %v1139 = vpack.c.b16 %v1132, %v1131
        %v1140 = vpack.c.b16 %v1134, %v1133
        %v1141 = vpack.c.b16 %v1136, %v1135
        %v1142 = vpack.c.b16 %v1138, %v1137
        %v1145 = vunpack.c.l.b16 %v1054
        %v1146 = vunpack.c.l.b16 %v1055
        %v1147 = vpack.c.b16 %v1146, %v1145
        %v1150 = vsel %vm716, %v1139, 0
        %v1153 = vsel %vm716, %v1140, 0
        %v1156 = vsel %vm716, %v1141, 0
        %v1159 = vsel %vm716, %v1142, 0
        %1161 = vmatpush.bf16.msra.mxu0 0
        %1162 = vmatpush.bf16.msra.mxu0 0
        %1163 = vmatpush.bf16.msra.mxu0 0
        %1164 = vmatpush.bf16.msra.mxu0 0
        %1165 = vmatpush.bf16.msra.mxu0 0
        %1166 = vmatpush.bf16.msra.mxu0 0
        %1167 = vmatpush.bf16.msra.mxu0 0
        %1168 = vmatpush.bf16.msra.mxu0 %v1147
        %1169 = vmatmul.bf16.gmra.mxu0 %v1150
        %v1170 = vpop.f32.mrf.mxu0
        %v1171 = vadd.f32 0.0, %v1170
        %v1172 = vpop.f32.mrf.mxu0
        %v1173 = vadd.f32 0.0, %v1172
        %1174 = vmatmul.bf16.gmra.mxu0 %v1153
        %v1175 = vpop.f32.mrf.mxu0
        %v1176 = vadd.f32 0.0, %v1175
        %v1177 = vpop.f32.mrf.mxu0
        %v1178 = vadd.f32 0.0, %v1177
        %1179 = vmatmul.bf16.gmra.mxu0 %v1156
        %v1180 = vpop.f32.mrf.mxu0
        %v1181 = vadd.f32 0.0, %v1180
        %v1182 = vpop.f32.mrf.mxu0
        %v1183 = vadd.f32 0.0, %v1182
        %1184 = vmatmul.bf16.gmra.mxu0 %v1159
        %v1185 = vpop.f32.mrf.mxu0
        %v1186 = vadd.f32 0.0, %v1185
        %v1187 = vpop.f32.mrf.mxu0
        %v1188 = vadd.f32 0.0, %v1187
        %1189 = vdwg.mxu0
        %v1190 = vadd.f32 %v248, %v1104
        %v1191 = vadd.f32 %v249, %v1106
        %v1192 = vadd.f32 %v250, %v1109
        %v1193 = vadd.f32 %v251, %v1111
        %v1194 = vadd.f32 %v252, %v1114
        %v1195 = vadd.f32 %v253, %v1116
        %v1196 = vadd.f32 %v254, %v1119
        %v1197 = vadd.f32 %v255, %v1121
        %v1198 = vadd.f32 %v256, %v1171
        %v1199 = vadd.f32 %v257, %v1173
        %v1200 = vadd.f32 %v258, %v1176
        %v1201 = vadd.f32 %v259, %v1178
        %v1202 = vadd.f32 %v260, %v1181
        %v1203 = vadd.f32 %v261, %v1183
        %v1204 = vadd.f32 %v262, %v1186
        %v1205 = vadd.f32 %v263, %v1188
        %v1206 = vld [vmem:[%s4] sm:$0xff]
        %v1207 = vld [vmem:[%s4 + $0x8] sm:$0xff]
        %v1208 = vld [vmem:[%s4 + $0x10] sm:$0xff]
        %v1209 = vld [vmem:[%s4 + $0x18] sm:$0xff]
        %v1210 = vld [vmem:[%s4 + $0x20] sm:$0xff]
        %v1211 = vld [vmem:[%s4 + $0x28] sm:$0xff]
        %v1212 = vld [vmem:[%s4 + $0x30] sm:$0xff]
        %v1213 = vld [vmem:[%s4 + $0x38] sm:$0xff]
        %1215 = vset.pattern.permute.xlu0 0
        %1216 = vperm.xlu0 %1215, %v1206
        %v1217 = vpop.permute.xlu0 %1216
        %1220 = vset.pattern.permute.xlu0 0
        %1221 = vperm.xlu0 %1220, %v1207
        %v1222 = vpop.permute.xlu0 %1221
        %1225 = vset.pattern.permute.xlu0 0
        %1226 = vperm.xlu0 %1225, %v1208
        %v1227 = vpop.permute.xlu0 %1226
        %1230 = vset.pattern.permute.xlu0 0
        %1231 = vperm.xlu0 %1230, %v1209
        %v1232 = vpop.permute.xlu0 %1231
        %1235 = vset.pattern.permute.xlu0 0
        %1236 = vperm.xlu0 %1235, %v1210
        %v1237 = vpop.permute.xlu0 %1236
        %1240 = vset.pattern.permute.xlu0 0
        %1241 = vperm.xlu0 %1240, %v1211
        %v1242 = vpop.permute.xlu0 %1241
        %1245 = vset.pattern.permute.xlu0 0
        %1246 = vperm.xlu0 %1245, %v1212
        %v1247 = vpop.permute.xlu0 %1246
        %1250 = vset.pattern.permute.xlu0 0
        %1251 = vperm.xlu0 %1250, %v1213
        %v1252 = vpop.permute.xlu0 %1251
        %v1254 = vadd.f32 %v1190, %v1217
        %v1255 = vadd.f32 %v1191, %v1222
        %v1256 = vadd.f32 %v1192, %v1227
        %v1257 = vadd.f32 %v1193, %v1232
        %v1258 = vadd.f32 %v1194, %v1237
        %v1259 = vadd.f32 %v1195, %v1242
        %v1260 = vadd.f32 %v1196, %v1247
        %v1261 = vadd.f32 %v1197, %v1252
        %v1262 = vadd.f32 %v1198, %v1217
        %v1263 = vadd.f32 %v1199, %v1222
        %v1264 = vadd.f32 %v1200, %v1227
        %v1265 = vadd.f32 %v1201, %v1232
        %v1266 = vadd.f32 %v1202, %v1237
        %v1267 = vadd.f32 %v1203, %v1242
        %v1268 = vadd.f32 %v1204, %v1247
        %v1269 = vadd.f32 %v1205, %v1252
        %1270 = vst.msk [vmem:[%s245] sm:$0xff] %vm716, %v1254
        %1271 = vst.msk [vmem:[%s245 + $0x8] sm:$0xff] %vm716, %v1255
        %1272 = vst.msk [vmem:[%s245 + $0x10] sm:$0xff] %vm716, %v1256
        %1273 = vst.msk [vmem:[%s245 + $0x18] sm:$0xff] %vm716, %v1257
        %1274 = vst.msk [vmem:[%s245 + $0x20] sm:$0xff] %vm716, %v1258
        %1275 = vst.msk [vmem:[%s245 + $0x28] sm:$0xff] %vm716, %v1259
        %1276 = vst.msk [vmem:[%s245 + $0x30] sm:$0xff] %vm716, %v1260
        %1277 = vst.msk [vmem:[%s245 + $0x38] sm:$0xff] %vm716, %v1261
        %1278 = vst.msk [vmem:[%s245 + $0x40] sm:$0xff] %vm716, %v1262
        %1279 = vst.msk [vmem:[%s245 + $0x48] sm:$0xff] %vm716, %v1263
        %1280 = vst.msk [vmem:[%s245 + $0x50] sm:$0xff] %vm716, %v1264
        %1281 = vst.msk [vmem:[%s245 + $0x58] sm:$0xff] %vm716, %v1265
        %1282 = vst.msk [vmem:[%s245 + $0x60] sm:$0xff] %vm716, %v1266
        %1283 = vst.msk [vmem:[%s245 + $0x68] sm:$0xff] %vm716, %v1267
        %1284 = vst.msk [vmem:[%s245 + $0x70] sm:$0xff] %vm716, %v1268
        %1285 = vst.msk [vmem:[%s245 + $0x78] sm:$0xff] %vm716, %v1269
        %s1286 = smul.u32 2, %s17
        %p1287 = scmp.lt.s32.totalorder %s1286, 3
        %s1288 = scalar_select %p1287, %s1286, 3
        %s1289 = smul.addr %s1288, 8
        %s1290 = smul.addr %s1289, 8
        %s1291 = scalar_lea.vmem %s5, %s1290
        // Predicated region
        $region45: #{tpu_custom_call.1} parent=39 // pred_check
          %p1292 = pneg %p145
        $region46: #{tpu_custom_call.1} parent=39 // pred_check_branch
          %1294 = sbr.rel (%p1292) target = $region48
        $region47: #{tpu_custom_call.1} parent=39 // pred_region
          %s1295 = smul.u32 2, %s17
        $region48: #{tpu_custom_call.1} parent=39 // pred_fallthru
          _
      $region40: #{tpu_custom_call.1} parent=5 // pred_fallthru
        _
      %p1296 = scmp.le.s32.totalorder 2, %s12
      // Predicated region
      $region49: #{tpu_custom_call.1} parent=5 // pred_check
        %p1297 = pneg %p1296
      $region50: #{tpu_custom_call.1} parent=5 // pred_check_branch
        %1299 = sbr.rel (%p1297) target = $region52
      $region51: #{tpu_custom_call.1} parent=5 // pred_region
        %s1300 = ssub.s32 %s12, 2
        // Predicated region
        $region53: #{tpu_custom_call.1} parent=51 // pred_check
          %p1301 = pneg %p151
        $region54: #{tpu_custom_call.1} parent=51 // pred_check_branch
          %1303 = sbr.rel (%p1301) target = $region56
        $region55: #{tpu_custom_call.1} parent=51 // pred_region
          %s1304 = smul.u32 2, %s18
          %p1305 = scmp.lt.s32.totalorder %s1304, 3
          %s1306 = scalar_select %p1305, %s1304, 3
          %s1307 = smul.addr %s1306, 8
          %s1308 = smul.addr %s1307, 8
          %s1309 = scalar_lea.vmem %s5, %s1308
        $region56: #{tpu_custom_call.1} parent=51 // pred_fallthru
          _
      $region52: #{tpu_custom_call.1} parent=5 // pred_fallthru
        _
    $region6: #{tpu_custom_call.1} parent=1 // loop_footer
      %s16 = sadd.s32 1, %s12
    $region7: #{tpu_custom_call.1} parent=1 // loop_footer_branch
      %11 = sbr.rel target = $region3
    $region8: #{tpu_custom_call.1} parent=1 // loop_exit
      _
    %1310 = vsyncpa [#allocation3], 1
    %s1311 = scalar_lea.sflag [#allocation3], 1
    %1312 = vsyncpa %s1311, 1

</llo_original>
